<compile_context>
chip_gen: v7x
topology: tpu7x:2x2x1
jax: 0.10.0
libtpu: 0.0.40
codegen_flags: <defaults>
</compile_context>

<pallas_src>
import jax
import jax.numpy as jnp
from jax.experimental import pallas as pl
from jax.experimental.pallas import tpu as pltpu

# ITU-R 601-2 luma coefficients (same as torchvision F.rgb_to_grayscale)
_R_W = 0.2989
_G_W = 0.587
_B_W = 0.114

# Double-buffered VMEM budget across all pipelined blocks of one pallas_call.
_VMEM_BUDGET_BYTES = 24 * 1024 * 1024
# Raise v5e's 16 MiB default scoped VMEM; equal to the v6e/v7x default, well under
# physical VMEM on all three generations (128/128/64 MiB).
_VMEM_LIMIT_BYTES = 32 * 1024 * 1024


def _round_up(x: int, m: int) -> int:
    return -(-x // m) * m


def _gray_kernel(*refs):
    """refs = (*input_refs, *output_refs); every block is (3, TP, TQ)."""
    n = len(refs) // 2
    for x_ref, o_ref in zip(refs[:n], refs[n:]):
        # per-channel loads: dense (TP, TQ) slabs of whole vregs, cast per channel
        r = x_ref[0].astype(jnp.float32)
        g = x_ref[1].astype(jnp.float32)
        b = x_ref[2].astype(jnp.float32)
        gray = (_R_W * r + _G_W * g + _B_W * b).astype(o_ref.dtype)
        # replicate gray into the 3 output channels: unmasked lane-dense stores
        o_ref[0] = gray
        o_ref[1] = gray
        o_ref[2] = gray


def _choose_tiles(P: int, Q: int, elem_budget: int):
    """Pick (tp, tq) for the trailing (P, Q) dims; elem_budget = elems/channel/block."""
    # lane (last-dim) tile: multiple of 128, or the full extent when Q <= 128
    if Q <= 128:
        tq = Q
    else:
        tq = 128 * max(1, min(Q // 128, max(1, elem_budget // (8 * 128))))
    # sublane (second-to-last) tile: multiple of 8, or the full extent
    max_rows = max(8, elem_budget // tq)
    if P <= max_rows:
        tp = P
    else:
        tp = (max_rows // 8) * 8
    return tp, tq


def _rgb_to_gray3_batch(imgs):
    """Grayscale-convert same-shaped (N, 3, H, W) float images in ONE pallas_call."""
    N, C, H, W = imgs[0].shape
    assert C == 3, "expected 3 input channels (RGB)"
    assert jnp.issubdtype(imgs[0].dtype, jnp.floating), "expected float images"
    # TODO(synk): integer (uint8) inputs would need torchvision-style rounding.

    hwl = H * W
    if hwl % 128 == 0:
        # free reshape (no copy): every channel becomes dense (rows, 128) slabs
        P, Q = hwl // 128, 128
        views = [im.reshape(N, 3, P, Q) for im in imgs]
    else:
        # tile natively over (H, W); Pallas masks ragged edge blocks -> still no pad/copy
        P, Q = H, W
        views = list(imgs)

    itemsize = jnp.dtype(imgs[0].dtype).itemsize
    # per call: len(imgs) * (1 input + 1 output) blocks, double-buffered, 3 channels each
    elem_budget = max(1024, _VMEM_BUDGET_BYTES // (4 * len(imgs) * 3 * itemsize))
    tp, tq = _choose_tiles(P, Q, elem_budget)

    # v7x has 2 TensorCores: keep >=2 parallel grid steps even for tiny single-image cases
    if N * pl.cdiv(P, tp) * pl.cdiv(Q, tq) == 1 and P > 8:
        tp = min(tp, _round_up((P + 1) // 2, 8))

    grid = (N, pl.cdiv(P, tp), pl.cdiv(Q, tq))
    spec = pl.BlockSpec((None, 3, tp, tq), lambda n, i, j: (n, 0, i, j))
    out_shapes = tuple(jax.ShapeDtypeStruct((N, 3, P, Q), im.dtype) for im in imgs)

    outs = pl.pallas_call(
        _gray_kernel,
        out_shape=out_shapes,
        grid=grid,
        in_specs=[spec] * len(imgs),
        out_specs=tuple([spec] * len(imgs)),
        compiler_params=pltpu.CompilerParams(
            dimension_semantics=("parallel", "parallel", "parallel"),
            vmem_limit_bytes=_VMEM_LIMIT_BYTES,
        ),
    )(*views)

    # reshape back to NCHW (copy-less when the flat view was used)
    return tuple(o.reshape(N, 3, H, W) for o in outs)


def rgb_to_grayscale3(img: jax.Array) -> jax.Array:
    """(N, 3, H, W) float -> (N, 3, H, W) grayscale replicated 3x."""
    return _rgb_to_gray3_batch([img])[0]


def convert_to_grayscale(images, disparities, masks):
    """Mirror of ConvertToGrayscale.forward.

    images: tuple (img_left, img_right), each (N, 3, H, W) float.
    disparities, masks: passed through unchanged.
    """
    img_left, img_right = images
    if img_left.shape == img_right.shape and img_left.dtype == img_right.dtype:
        # single fused launch for the stereo pair
        out_l, out_r = _rgb_to_gray3_batch([img_left, img_right])
    else:
        out_l = rgb_to_grayscale3(img_left)
        out_r = rgb_to_grayscale3(img_right)
    return (out_l, out_r), disparities, masks


if __name__ == "__main__":
    key = jax.random.PRNGKey(0)
    k1, k2, k3, k4 = jax.random.split(key, 4)

    N, C, H, W = 2, 3, 16, 16
    img_left = jax.random.uniform(k1, (N, C, H, W), dtype=jnp.float32)
    img_right = jax.random.uniform(k2, (N, C, H, W), dtype=jnp.float32)
    disparities = (jax.random.normal(k3, (N, 1, H, W), dtype=jnp.float32), None)
    masks = (jax.random.uniform(k4, (N, 1, H, W)) > 0.5, None)

    (out_l, out_r), disp_out, mask_out = convert_to_grayscale(
        (img_left, img_right), disparities, masks
    )
    out_l = jax.block_until_ready(out_l)
    out_r = jax.block_until_ready(out_r)

    # reference check against plain JAX
    def ref_gray3(x):
        xf = x.astype(jnp.float32)
        g = _R_W * xf[:, 0] + _G_W * xf[:, 1] + _B_W * xf[:, 2]
        return jnp.broadcast_to(g[:, None], x.shape).astype(x.dtype)

    assert out_l.shape == img_left.shape and out_r.shape == img_right.shape
    assert jnp.allclose(out_l, ref_gray3(img_left), atol=1e-6)
    assert jnp.allclose(out_r, ref_gray3(img_right), atol=1e-6)
    assert disp_out is disparities and mask_out is masks

    print("KERNEL_OK")
</pallas_src>

<mosaic_0001>
module attributes {stable_mosaic.version = 11 : i64} {
  func.func @_gray_kernel(%arg0: i32, %arg1: i32, %arg2: i32, %arg3: memref<1x3x2x128xf32, #tpu.memory_space<vmem>>, %arg4: memref<1x3x2x128xf32, #tpu.memory_space<vmem>>, %arg5: memref<1x3x2x128xf32, #tpu.memory_space<vmem>>, %arg6: memref<1x3x2x128xf32, #tpu.memory_space<vmem>>) attributes {dimension_semantics = [#tpu.dimension_semantics<parallel>, #tpu.dimension_semantics<parallel>, #tpu.dimension_semantics<parallel>], iteration_bounds = array<i64: 2, 1, 1>, scalar_prefetch = 0 : i64, scratch_operands = 0 : i64, tpu.core_type = #tpu.core_type<tc>, window_params = [{transform_indices = @transform_0, window_bounds = array<i64: 1, 3, 2, 128>}, {transform_indices = @transform_1, window_bounds = array<i64: 1, 3, 2, 128>}, {transform_indices = @transform_2, window_bounds = array<i64: 1, 3, 2, 128>}, {transform_indices = @transform_3, window_bounds = array<i64: 1, 3, 2, 128>}]} {
    %c0 = arith.constant 0 : index
    %c0_0 = arith.constant 0 : index
    %c0_1 = arith.constant 0 : index
    %c0_2 = arith.constant 0 : index
    %0 = vector.load %arg3[%c0, %c0_0, %c0_1, %c0_2] : memref<1x3x2x128xf32, #tpu.memory_space<vmem>>, vector<1x1x2x128xf32>
    %1 = vector.shape_cast %0 : vector<1x1x2x128xf32> to vector<2x128xf32>
    %c0_3 = arith.constant 0 : index
    %c1 = arith.constant 1 : index
    %c0_4 = arith.constant 0 : index
    %c0_5 = arith.constant 0 : index
    %2 = vector.load %arg3[%c0_3, %c1, %c0_4, %c0_5] : memref<1x3x2x128xf32, #tpu.memory_space<vmem>>, vector<1x1x2x128xf32>
    %3 = vector.shape_cast %2 : vector<1x1x2x128xf32> to vector<2x128xf32>
    %c0_6 = arith.constant 0 : index
    %c2 = arith.constant 2 : index
    %c0_7 = arith.constant 0 : index
    %c0_8 = arith.constant 0 : index
    %4 = vector.load %arg3[%c0_6, %c2, %c0_7, %c0_8] : memref<1x3x2x128xf32, #tpu.memory_space<vmem>>, vector<1x1x2x128xf32>
    %5 = vector.shape_cast %4 : vector<1x1x2x128xf32> to vector<2x128xf32>
    %cst = arith.constant 2.989000e-01 : f32
    %6 = vector.broadcast %cst : f32 to vector<2x128xf32>
    %7 = arith.mulf %6, %1 : vector<2x128xf32>
    %cst_9 = arith.constant 5.870000e-01 : f32
    %8 = vector.broadcast %cst_9 : f32 to vector<2x128xf32>
    %9 = arith.mulf %8, %3 : vector<2x128xf32>
    %10 = arith.addf %7, %9 : vector<2x128xf32>
    %cst_10 = arith.constant 1.140000e-01 : f32
    %11 = vector.broadcast %cst_10 : f32 to vector<2x128xf32>
    %12 = arith.mulf %11, %5 : vector<2x128xf32>
    %13 = arith.addf %10, %12 : vector<2x128xf32>
    %c0_11 = arith.constant 0 : index
    %c0_12 = arith.constant 0 : index
    %c0_13 = arith.constant 0 : index
    %c0_14 = arith.constant 0 : index
    %14 = vector.load %arg5[%c0_11, %c0_12, %c0_13, %c0_14] : memref<1x3x2x128xf32, #tpu.memory_space<vmem>>, vector<1x1x2x128xf32>
    %15 = vector.shape_cast %14 : vector<1x1x2x128xf32> to vector<2x128xf32>
    %16 = vector.shape_cast %13 : vector<2x128xf32> to vector<1x1x2x128xf32>
    tpu.vector_store %arg5[%c0_11, %c0_12, %c0_13, %c0_14], %16 {strides = array<i32>} : memref<1x3x2x128xf32, #tpu.memory_space<vmem>>, vector<1x1x2x128xf32>,
    %c0_15 = arith.constant 0 : index
    %c1_16 = arith.constant 1 : index
    %c0_17 = arith.constant 0 : index
    %c0_18 = arith.constant 0 : index
    %17 = vector.load %arg5[%c0_15, %c1_16, %c0_17, %c0_18] : memref<1x3x2x128xf32, #tpu.memory_space<vmem>>, vector<1x1x2x128xf32>
    %18 = vector.shape_cast %17 : vector<1x1x2x128xf32> to vector<2x128xf32>
    %19 = vector.shape_cast %13 : vector<2x128xf32> to vector<1x1x2x128xf32>
    tpu.vector_store %arg5[%c0_15, %c1_16, %c0_17, %c0_18], %19 {strides = array<i32>} : memref<1x3x2x128xf32, #tpu.memory_space<vmem>>, vector<1x1x2x128xf32>,
    %c0_19 = arith.constant 0 : index
    %c2_20 = arith.constant 2 : index
    %c0_21 = arith.constant 0 : index
    %c0_22 = arith.constant 0 : index
    %20 = vector.load %arg5[%c0_19, %c2_20, %c0_21, %c0_22] : memref<1x3x2x128xf32, #tpu.memory_space<vmem>>, vector<1x1x2x128xf32>
    %21 = vector.shape_cast %20 : vector<1x1x2x128xf32> to vector<2x128xf32>
    %22 = vector.shape_cast %13 : vector<2x128xf32> to vector<1x1x2x128xf32>
    tpu.vector_store %arg5[%c0_19, %c2_20, %c0_21, %c0_22], %22 {strides = array<i32>} : memref<1x3x2x128xf32, #tpu.memory_space<vmem>>, vector<1x1x2x128xf32>,
    %c0_23 = arith.constant 0 : index
    %c0_24 = arith.constant 0 : index
    %c0_25 = arith.constant 0 : index
    %c0_26 = arith.constant 0 : index
    %23 = vector.load %arg4[%c0_23, %c0_24, %c0_25, %c0_26] : memref<1x3x2x128xf32, #tpu.memory_space<vmem>>, vector<1x1x2x128xf32>
    %24 = vector.shape_cast %23 : vector<1x1x2x128xf32> to vector<2x128xf32>
    %c0_27 = arith.constant 0 : index
    %c1_28 = arith.constant 1 : index
    %c0_29 = arith.constant 0 : index
    %c0_30 = arith.constant 0 : index
    %25 = vector.load %arg4[%c0_27, %c1_28, %c0_29, %c0_30] : memref<1x3x2x128xf32, #tpu.memory_space<vmem>>, vector<1x1x2x128xf32>
    %26 = vector.shape_cast %25 : vector<1x1x2x128xf32> to vector<2x128xf32>
    %c0_31 = arith.constant 0 : index
    %c2_32 = arith.constant 2 : index
    %c0_33 = arith.constant 0 : index
    %c0_34 = arith.constant 0 : index
    %27 = vector.load %arg4[%c0_31, %c2_32, %c0_33, %c0_34] : memref<1x3x2x128xf32, #tpu.memory_space<vmem>>, vector<1x1x2x128xf32>
    %28 = vector.shape_cast %27 : vector<1x1x2x128xf32> to vector<2x128xf32>
    %cst_35 = arith.constant 2.989000e-01 : f32
    %29 = vector.broadcast %cst_35 : f32 to vector<2x128xf32>
    %30 = arith.mulf %29, %24 : vector<2x128xf32>
    %cst_36 = arith.constant 5.870000e-01 : f32
    %31 = vector.broadcast %cst_36 : f32 to vector<2x128xf32>
    %32 = arith.mulf %31, %26 : vector<2x128xf32>
    %33 = arith.addf %30, %32 : vector<2x128xf32>
    %cst_37 = arith.constant 1.140000e-01 : f32
    %34 = vector.broadcast %cst_37 : f32 to vector<2x128xf32>
    %35 = arith.mulf %34, %28 : vector<2x128xf32>
    %36 = arith.addf %33, %35 : vector<2x128xf32>
    %c0_38 = arith.constant 0 : index
    %c0_39 = arith.constant 0 : index
    %c0_40 = arith.constant 0 : index
    %c0_41 = arith.constant 0 : index
    %37 = vector.load %arg6[%c0_38, %c0_39, %c0_40, %c0_41] : memref<1x3x2x128xf32, #tpu.memory_space<vmem>>, vector<1x1x2x128xf32>
    %38 = vector.shape_cast %37 : vector<1x1x2x128xf32> to vector<2x128xf32>
    %39 = vector.shape_cast %36 : vector<2x128xf32> to vector<1x1x2x128xf32>
    tpu.vector_store %arg6[%c0_38, %c0_39, %c0_40, %c0_41], %39 {strides = array<i32>} : memref<1x3x2x128xf32, #tpu.memory_space<vmem>>, vector<1x1x2x128xf32>,
    %c0_42 = arith.constant 0 : index
    %c1_43 = arith.constant 1 : index
    %c0_44 = arith.constant 0 : index
    %c0_45 = arith.constant 0 : index
    %40 = vector.load %arg6[%c0_42, %c1_43, %c0_44, %c0_45] : memref<1x3x2x128xf32, #tpu.memory_space<vmem>>, vector<1x1x2x128xf32>
    %41 = vector.shape_cast %40 : vector<1x1x2x128xf32> to vector<2x128xf32>
    %42 = vector.shape_cast %36 : vector<2x128xf32> to vector<1x1x2x128xf32>
    tpu.vector_store %arg6[%c0_42, %c1_43, %c0_44, %c0_45], %42 {strides = array<i32>} : memref<1x3x2x128xf32, #tpu.memory_space<vmem>>, vector<1x1x2x128xf32>,
    %c0_46 = arith.constant 0 : index
    %c2_47 = arith.constant 2 : index
    %c0_48 = arith.constant 0 : index
    %c0_49 = arith.constant 0 : index
    %43 = vector.load %arg6[%c0_46, %c2_47, %c0_48, %c0_49] : memref<1x3x2x128xf32, #tpu.memory_space<vmem>>, vector<1x1x2x128xf32>
    %44 = vector.shape_cast %43 : vector<1x1x2x128xf32> to vector<2x128xf32>
    %45 = vector.shape_cast %36 : vector<2x128xf32> to vector<1x1x2x128xf32>
    tpu.vector_store %arg6[%c0_46, %c2_47, %c0_48, %c0_49], %45 {strides = array<i32>} : memref<1x3x2x128xf32, #tpu.memory_space<vmem>>, vector<1x1x2x128xf32>,
    return
  }
  func.func @transform_0(%arg0: i32, %arg1: i32, %arg2: i32) -> (i32, i32, i32, i32) {
    %c0_i32 = arith.constant 0 : i32
    %c0_i32_0 = arith.constant 0 : i32
    return %arg0, %c0_i32, %arg1, %arg2 : i32, i32, i32, i32
  }
  func.func @transform_1(%arg0: i32, %arg1: i32, %arg2: i32) -> (i32, i32, i32, i32) {
    %c0_i32 = arith.constant 0 : i32
    %c0_i32_0 = arith.constant 0 : i32
    return %arg0, %c0_i32, %arg1, %arg2 : i32, i32, i32, i32
  }
  func.func @transform_2(%arg0: i32, %arg1: i32, %arg2: i32) -> (i32, i32, i32, i32) {
    %c0_i32 = arith.constant 0 : i32
    %c0_i32_0 = arith.constant 0 : i32
    return %arg0, %c0_i32, %arg1, %arg2 : i32, i32, i32, i32
  }
  func.func @transform_3(%arg0: i32, %arg1: i32, %arg2: i32) -> (i32, i32, i32, i32) {
    %c0_i32 = arith.constant 0 : i32
    %c0_i32_0 = arith.constant 0 : i32
    return %arg0, %c0_i32, %arg1, %arg2 : i32, i32, i32, i32
  }
}

</mosaic_0001>

<llo_original>
// kernel: tpu_custom_call.1
$region0: #{tpu_custom_call.1}
  #allocation0 [shape = 'u32[]', space=smem, size = 0x4, offset = 0x4, fixed_abs, tag = 'smem constant byte address 0x4 - core index']
  #allocation1 [shape = 'u32[144,128]{1,0:T(1,128)}', space=vmem, size = 0x12000, scoped, tag = 'internal scratch']
  %s0 = inlined_call_operand.hbm [shape: f32[2,3,2,128], index: 0, kind: input, shape index: {}]
  %s1 = inlined_call_operand.hbm [shape: f32[2,3,2,128], index: 1, kind: input, shape index: {}]
  %s2 = inlined_call_operand.hbm [shape: f32[2,3,2,128], index: 2, kind: output, shape index: {0}]
  %s3 = inlined_call_operand.hbm [shape: f32[2,3,2,128], index: 3, kind: output, shape index: {1}]
  %4 = xla_tuple %s2, %s3
  %s5 = sld [smem:[#allocation0]]
  $region57: #{tpu_custom_call.1} parent=0
    _
  %s7 = ssub.s32 1, %s5
  %s8 = scalar_select 0, %s7, %s5
  $region1: #{tpu_custom_call.1} parent=0
    #allocation2 [shape = 'u8[6144]{0}', space=vmem, size = 0x1800, scoped, tag = 'input window, operand 0']
    #allocation3 [shape = 's32[2]{0}', space=sflag, size = 0x8, scoped, tag = 'scoped memory for tpu_custom_call.1']
    #allocation4 [shape = 's32[2]{0}', space=sflag, size = 0x8, scoped, tag = 'scoped memory for tpu_custom_call.1']
    #allocation5 [shape = 'u8[6144]{0}', space=vmem, size = 0x1800, scoped, tag = 'input window, operand 1']
    #allocation6 [shape = 's32[2]{0}', space=sflag, size = 0x8, scoped, tag = 'scoped memory for tpu_custom_call.1']
    #allocation7 [shape = 'u8[6144]{0}', space=vmem, size = 0x1800, scoped, tag = 'output window, operand 0']
    #allocation8 [shape = 'u8[6144]{0}', space=vmem, size = 0x1800, scoped, tag = 'output window, operand 1']
    #allocation9 [shape = 's32[2]{0}', space=sflag, size = 0x8, scoped, tag = 'scoped memory for tpu_custom_call.1']
    %9 = vsyncpa [#allocation3], 0
    %s10 = scalar_lea.sflag [#allocation3], 1
    %11 = vsyncpa %s10, 0
    %12 = vsyncpa [#allocation6], 0
    %s13 = scalar_lea.sflag [#allocation6], 1
    %14 = vsyncpa %s13, 0
    %15 = vsyncpa [#allocation4], 0
    %s16 = scalar_lea.sflag [#allocation4], 1
    %17 = vsyncpa %s16, 0
    %18 = vsyncpa [#allocation9], 0
    %s19 = scalar_lea.sflag [#allocation9], 1
    %20 = vsyncpa %s19, 0
    loop: start=0, step=1, limit=4
    $region2: #{tpu_custom_call.1} parent=1 // loop_pre_header
      _
    $region3: #{tpu_custom_call.1} parent=1 // loop_header
      %s22 = sphi 0, %s26
      %p23 = scmp.ge.s32.totalorder %s22, 4
      %s29 = sphi 0, %s48
      %s30 = sphi 0, %s44
      %s31 = sphi 0, %s40
      %s32 = sphi 0, %s29
      %s33 = sphi 0, %s30
      %s34 = sphi 0, %s31
      %s35 = sphi 0, %s32
      %s36 = sphi 0, %s33
      %s37 = sphi 0, %s34
      %s55 = sphi 0, %s57
      %s58 = sphi 0, %s55
      %s59 = sphi 0, %s58
      %s75 = sphi 0, %s59
      %s85 = sphi 0, %s87
      %s88 = sphi 0, %s85
      %s89 = sphi 0, %s88
      %s105 = sphi 0, %s89
      %s115 = sphi 0, %s117
      %s118 = sphi 0, %s115
      %s119 = sphi 0, %s118
      %s135 = sphi 0, %s119
      %s145 = sphi 0, %s147
      %s148 = sphi 0, %s145
      %s149 = sphi 0, %s148
      %s165 = sphi 0, %s149
    $region4: #{tpu_custom_call.1} parent=1 // loop_header_branch
      %25 = sbr.rel (%p23) target = $region8
    $region5: #{tpu_custom_call.1} parent=1 // loop_body
      %s27 = ssub.s32 %s22, 1
      %s28 = ssub.s32 %s22, 2
      %s38 = sadd.s32 1, %s31
      %p39 = scmp.ge.s32.totalorder %s38, 1
      %s40 = scalar_select %p39, 0, %s38
      %s41 = sadd.s32 1, %s30
      %s42 = scalar_select %p39, %s41, %s30
      %p43 = scmp.ge.s32.totalorder %s42, 1
      %s44 = scalar_select %p43, 0, %s42
      %s45 = sadd.s32 1, %s29
      %s46 = scalar_select %p43, %s45, %s29
      %p47 = scmp.ge.s32.totalorder %s46, 2
      %s48 = scalar_select %p47, 0, %s46
      %s49 = ssub.s32 %s29, %s48
      %s50 = ssub.s32 %s30, %s44
      %s51 = sor.u32 %s49, %s50
      %s52 = ssub.s32 %s31, %s40
      %s53 = sor.u32 %s51, %s52
      %p54 = scmp.eq.s32.totalorder %s53, 0
      %s56 = sadd.s32 %s55, 1
      %s57 = scalar_select %p54, %s55, %s56
      %p60 = pneg %p54
      %p61 = scmp.eq.s32.totalorder %s22, 1
      %p62 = por %p60, %p61
      %p63 = scmp.ne.s32.totalorder %s55, %s58
      %p64 = scmp.eq.s32.totalorder %s22, 0
      %p65 = por %p63, %p64
      %p66 = scmp.ne.s32.totalorder %s55, %s58
      %p67 = scmp.eq.s32.totalorder %s27, 1
      %p68 = por %p66, %p67
      %p69 = scmp.ne.s32.totalorder %s58, %s59
      %p70 = scmp.eq.s32.totalorder %s27, 0
      %p71 = por %p69, %p70
      %p72 = scmp.ne.s32.totalorder %s58, %s59
      %p73 = scmp.eq.s32.totalorder %s28, 1
      %p74 = por %p72, %p73
      %p76 = scmp.ne.s32.totalorder %s59, %s75
      %p77 = scmp.eq.s32.totalorder %s28, 0
      %p78 = por %p76, %p77
      %s79 = ssub.s32 %s29, %s48
      %s80 = ssub.s32 %s30, %s44
      %s81 = sor.u32 %s79, %s80
      %s82 = ssub.s32 %s31, %s40
      %s83 = sor.u32 %s81, %s82
      %p84 = scmp.eq.s32.totalorder %s83, 0
      %s86 = sadd.s32 %s85, 1
      %s87 = scalar_select %p84, %s85, %s86
      %p90 = pneg %p84
      %p91 = scmp.eq.s32.totalorder %s22, 1
      %p92 = por %p90, %p91
      %p93 = scmp.ne.s32.totalorder %s85, %s88
      %p94 = scmp.eq.s32.totalorder %s22, 0
      %p95 = por %p93, %p94
      %p96 = scmp.ne.s32.totalorder %s85, %s88
      %p97 = scmp.eq.s32.totalorder %s27, 1
      %p98 = por %p96, %p97
      %p99 = scmp.ne.s32.totalorder %s88, %s89
      %p100 = scmp.eq.s32.totalorder %s27, 0
      %p101 = por %p99, %p100
      %p102 = scmp.ne.s32.totalorder %s88, %s89
      %p103 = scmp.eq.s32.totalorder %s28, 1
      %p104 = por %p102, %p103
      %p106 = scmp.ne.s32.totalorder %s89, %s105
      %p107 = scmp.eq.s32.totalorder %s28, 0
      %p108 = por %p106, %p107
      %s109 = ssub.s32 %s29, %s48
      %s110 = ssub.s32 %s30, %s44
      %s111 = sor.u32 %s109, %s110
      %s112 = ssub.s32 %s31, %s40
      %s113 = sor.u32 %s111, %s112
      %p114 = scmp.eq.s32.totalorder %s113, 0
      %s116 = sadd.s32 %s115, 1
      %s117 = scalar_select %p114, %s115, %s116
      %p120 = pneg %p114
      %p121 = scmp.eq.s32.totalorder %s22, 1
      %p122 = por %p120, %p121
      %p123 = scmp.ne.s32.totalorder %s115, %s118
      %p124 = scmp.eq.s32.totalorder %s22, 0
      %p125 = por %p123, %p124
      %p126 = scmp.ne.s32.totalorder %s115, %s118
      %p127 = scmp.eq.s32.totalorder %s27, 1
      %p128 = por %p126, %p127
      %p129 = scmp.ne.s32.totalorder %s118, %s119
      %p130 = scmp.eq.s32.totalorder %s27, 0
      %p131 = por %p129, %p130
      %p132 = scmp.ne.s32.totalorder %s118, %s119
      %p133 = scmp.eq.s32.totalorder %s28, 1
      %p134 = por %p132, %p133
      %p136 = scmp.ne.s32.totalorder %s119, %s135
      %p137 = scmp.eq.s32.totalorder %s28, 0
      %p138 = por %p136, %p137
      %s139 = ssub.s32 %s29, %s48
      %s140 = ssub.s32 %s30, %s44
      %s141 = sor.u32 %s139, %s140
      %s142 = ssub.s32 %s31, %s40
      %s143 = sor.u32 %s141, %s142
      %p144 = scmp.eq.s32.totalorder %s143, 0
      %s146 = sadd.s32 %s145, 1
      %s147 = scalar_select %p144, %s145, %s146
      %p150 = pneg %p144
      %p151 = scmp.eq.s32.totalorder %s22, 1
      %p152 = por %p150, %p151
      %p153 = scmp.ne.s32.totalorder %s145, %s148
      %p154 = scmp.eq.s32.totalorder %s22, 0
      %p155 = por %p153, %p154
      %p156 = scmp.ne.s32.totalorder %s145, %s148
      %p157 = scmp.eq.s32.totalorder %s27, 1
      %p158 = por %p156, %p157
      %p159 = scmp.ne.s32.totalorder %s148, %s149
      %p160 = scmp.eq.s32.totalorder %s27, 0
      %p161 = por %p159, %p160
      %p162 = scmp.ne.s32.totalorder %s148, %s149
      %p163 = scmp.eq.s32.totalorder %s28, 1
      %p164 = por %p162, %p163
      %p166 = scmp.ne.s32.totalorder %s149, %s165
      %p167 = scmp.eq.s32.totalorder %s28, 0
      %p168 = por %p166, %p167
      %p169 = scmp.le.s32.totalorder 1, %s22
      %p170 = scmp.lt.s32.totalorder %s22, 3
      %p171 = pnand %p169, %p170
      %p172 = pneg %p171
      // Predicated region
      $region9: #{tpu_custom_call.1} parent=5 // pred_check
        _
      $region10: #{tpu_custom_call.1} parent=5 // pred_check_branch
        %174 = sbr.rel (%p171) target = $region12
      $region11: #{tpu_custom_call.1} parent=5 // pred_region
        %s175 = ssub.s32 %s22, 1
      $region12: #{tpu_custom_call.1} parent=5 // pred_fallthru
        _
      %p176 = scmp.lt.s32.totalorder %s22, 2
      // Predicated region
      $region13: #{tpu_custom_call.1} parent=5 // pred_check
        %p177 = pneg %p176
      $region14: #{tpu_custom_call.1} parent=5 // pred_check_branch
        %179 = sbr.rel (%p177) target = $region16
      $region15: #{tpu_custom_call.1} parent=5 // pred_region
        // Predicated region
        $region17: #{tpu_custom_call.1} parent=15 // pred_check
          %p180 = pneg %p65
        $region18: #{tpu_custom_call.1} parent=15 // pred_check_branch
          %182 = sbr.rel (%p180) target = $region20
        $region19: #{tpu_custom_call.1} parent=15 // pred_region
          %s183 = sand.u32 %s55, 1
          %s184 = scalar_lea.sflag [#allocation3], %s183
          %s185 = sand.u32 %s55, 1
          %s186 = smul.addr %s185, 6
          %s187 = scalar_lea.vmem [#allocation2], %s186
          %s189 = ssub.s32 96, 96
          %190 = vsyncadd %s184, %s189
          %s191 = sadd.s32 %s31, %s30
          %s192 = smul.addr %s29, 3
          %s193 = sadd.s32 %s191, %s192
          %s194 = smul.addr %s193, 32
          %s195 = scalar_lea.hbm %s0, %s194
          %s196 = sshll.u32 %s187, 4
          %s197 = int_to_ptr.vmem [resolvable:$true] %s196
          %202 = dma.hbm_to_vmem [thread:$0]  %s195, 96, %s197, %s184, 32, 32, 2
        $region20: #{tpu_custom_call.1} parent=15 // pred_fallthru
          _
        // Predicated region
        $region21: #{tpu_custom_call.1} parent=15 // pred_check
          %p203 = pneg %p95
        $region22: #{tpu_custom_call.1} parent=15 // pred_check_branch
          %205 = sbr.rel (%p203) target = $region24
        $region23: #{tpu_custom_call.1} parent=15 // pred_region
          %s206 = sand.u32 %s85, 1
          %s207 = scalar_lea.sflag [#allocation6], %s206
          %s208 = sand.u32 %s85, 1
          %s209 = smul.addr %s208, 6
          %s210 = scalar_lea.vmem [#allocation5], %s209
          %s212 = ssub.s32 96, 96
          %213 = vsyncadd %s207, %s212
          %s214 = sadd.s32 %s31, %s30
          %s215 = smul.addr %s29, 3
          %s216 = sadd.s32 %s214, %s215
          %s217 = smul.addr %s216, 32
          %s218 = scalar_lea.hbm %s1, %s217
          %s219 = sshll.u32 %s210, 4
          %s220 = int_to_ptr.vmem [resolvable:$true] %s219
          %225 = dma.hbm_to_vmem [thread:$0]  %s218, 96, %s220, %s207, 32, 32, 2
        $region24: #{tpu_custom_call.1} parent=15 // pred_fallthru
          _
      $region16: #{tpu_custom_call.1} parent=5 // pred_fallthru
        _
      %p226 = scmp.le.s32.totalorder 1, %s22
      %p227 = scmp.lt.s32.totalorder %s22, 3
      %p228 = pnand %p226, %p227
      %p229 = pneg %p228
      // Predicated region
      $region25: #{tpu_custom_call.1} parent=5 // pred_check
        _
      $region26: #{tpu_custom_call.1} parent=5 // pred_check_branch
        %231 = sbr.rel (%p228) target = $region28
      $region27: #{tpu_custom_call.1} parent=5 // pred_region
        %s232 = ssub.s32 %s22, 1
        %s233 = sand.u32 %s58, 1
        %s234 = scalar_lea.sflag [#allocation3], %s233
        %s235 = sand.u32 %s58, 1
        %s236 = smul.addr %s235, 6
        %s237 = scalar_lea.vmem [#allocation2], %s236
        // Predicated region
        $region29: #{tpu_custom_call.1} parent=27 // pred_check
          %p238 = pneg %p71
        $region30: #{tpu_custom_call.1} parent=27 // pred_check_branch
          %240 = sbr.rel (%p238) target = $region32
        $region31: #{tpu_custom_call.1} parent=27 // pred_region
          %241 = dma.done %s234, 96
        $region32: #{tpu_custom_call.1} parent=27 // pred_fallthru
          _
        %s242 = sand.u32 %s88, 1
        %s243 = scalar_lea.sflag [#allocation6], %s242
        %s244 = sand.u32 %s88, 1
        %s245 = smul.addr %s244, 6
        %s246 = scalar_lea.vmem [#allocation5], %s245
        // Predicated region
        $region33: #{tpu_custom_call.1} parent=27 // pred_check
          %p247 = pneg %p101
        $region34: #{tpu_custom_call.1} parent=27 // pred_check_branch
          %249 = sbr.rel (%p247) target = $region36
        $region35: #{tpu_custom_call.1} parent=27 // pred_region
          %250 = dma.done %s243, 96
        $region36: #{tpu_custom_call.1} parent=27 // pred_fallthru
          _
        %s251 = sand.u32 %s58, 1
        %s252 = scalar_lea.sflag [#allocation3], %s251
        %s253 = sand.u32 %s58, 1
        %s254 = smul.addr %s253, 6
        %s255 = scalar_lea.vmem [#allocation2], %s254
        %p256 = pneg %p71
        %p257 = pneg %p68
        %s258 = sand.u32 %s88, 1
        %s259 = scalar_lea.sflag [#allocation6], %s258
        %s260 = sand.u32 %s88, 1
        %s261 = smul.addr %s260, 6
        %s262 = scalar_lea.vmem [#allocation5], %s261
        %p263 = pneg %p101
        %p264 = pneg %p98
        %p265 = pneg %p131
        %p266 = pneg %p128
        %s267 = sand.u32 %s118, 1
        %s268 = scalar_lea.sflag [#allocation4], %s267
        %s269 = sand.u32 %s118, 1
        %s270 = smul.addr %s269, 6
        %s271 = scalar_lea.vmem [#allocation7], %s270
        %p272 = pneg %p161
        %p273 = pneg %p158
        %s274 = sand.u32 %s148, 1
        %s275 = scalar_lea.sflag [#allocation9], %s274
        %s276 = sand.u32 %s148, 1
        %s277 = smul.addr %s276, 6
        %s278 = scalar_lea.vmem [#allocation8], %s277
        %v279 = vld [vmem:[%s237] sm:$0x3]
        %s280 = scalar_lea.vmem %s237, 2 [#allocation2]
        %v281 = vld [vmem:[%s280] sm:$0x3]
        %s282 = scalar_lea.vmem %s237, 4 [#allocation2]
        %v283 = vld [vmem:[%s282] sm:$0x3]
        %v284 = vmul.f32 %v279, 0.2989
        %v285 = vmul.f32 %v281, 0.587
        %v286 = vadd.f32 %v284, %v285
        %v287 = vmul.f32 %v283, 0.114
        %v288 = vadd.f32 %v286, %v287
        %289 = vst [vmem:[%s271] sm:$0x3] %v288
        %s290 = scalar_lea.vmem %s271, 2 [#allocation7]
        %291 = vst [vmem:[%s290] sm:$0x3] %v288
        %s292 = scalar_lea.vmem %s271, 4 [#allocation7]
        %293 = vst [vmem:[%s292] sm:$0x3] %v288
        %v294 = vld [vmem:[%s246] sm:$0x3]
        %s295 = scalar_lea.vmem %s246, 2 [#allocation5]
        %v296 = vld [vmem:[%s295] sm:$0x3]
        %s297 = scalar_lea.vmem %s246, 4 [#allocation5]
        %v298 = vld [vmem:[%s297] sm:$0x3]
        %v299 = vmul.f32 %v294, 0.2989
        %v300 = vmul.f32 %v296, 0.587
        %v301 = vadd.f32 %v299, %v300
        %v302 = vmul.f32 %v298, 0.114
        %v303 = vadd.f32 %v301, %v302
        %304 = vst [vmem:[%s278] sm:$0x3] %v303
        %s305 = scalar_lea.vmem %s278, 2 [#allocation8]
        %306 = vst [vmem:[%s305] sm:$0x3] %v303
        %s307 = scalar_lea.vmem %s278, 4 [#allocation8]
        %308 = vst [vmem:[%s307] sm:$0x3] %v303
        %s309 = sand.u32 %s118, 1
        %s310 = scalar_lea.sflag [#allocation4], %s309
        %s311 = sand.u32 %s118, 1
        %s312 = smul.addr %s311, 6
        %s313 = scalar_lea.vmem [#allocation7], %s312
        %s314 = sand.u32 %s148, 1
        %s315 = scalar_lea.sflag [#allocation9], %s314
        %s316 = sand.u32 %s148, 1
        %s317 = smul.addr %s316, 6
        %s318 = scalar_lea.vmem [#allocation8], %s317
        // Predicated region
        $region37: #{tpu_custom_call.1} parent=27 // pred_check
          %p319 = pneg %p128
        $region38: #{tpu_custom_call.1} parent=27 // pred_check_branch
          %321 = sbr.rel (%p319) target = $region40
        $region39: #{tpu_custom_call.1} parent=27 // pred_region
          %s323 = ssub.s32 96, 96
          %324 = vsyncadd %s310, %s323
          %s325 = sadd.s32 %s34, %s33
          %s326 = smul.addr %s32, 3
          %s327 = sadd.s32 %s325, %s326
          %s328 = smul.addr %s327, 32
          %s329 = scalar_lea.hbm %s2, %s328
          %s330 = sshll.u32 %s313, 4
          %s331 = int_to_ptr.vmem [resolvable:$true] %s330
          %336 = dma.vmem_to_hbm [thread:$0]  %s331, 96, %s329, %s310, 32, 32, 2
        $region40: #{tpu_custom_call.1} parent=27 // pred_fallthru
          _
        // Predicated region
        $region41: #{tpu_custom_call.1} parent=27 // pred_check
          %p337 = pneg %p158
        $region42: #{tpu_custom_call.1} parent=27 // pred_check_branch
          %339 = sbr.rel (%p337) target = $region44
        $region43: #{tpu_custom_call.1} parent=27 // pred_region
          %s341 = ssub.s32 96, 96
          %342 = vsyncadd %s315, %s341
          %s343 = sadd.s32 %s34, %s33
          %s344 = smul.addr %s32, 3
          %s345 = sadd.s32 %s343, %s344
          %s346 = smul.addr %s345, 32
          %s347 = scalar_lea.hbm %s3, %s346
          %s348 = sshll.u32 %s318, 4
          %s349 = int_to_ptr.vmem [resolvable:$true] %s348
          %354 = dma.vmem_to_hbm [thread:$0]  %s349, 96, %s347, %s315, 32, 32, 2
        $region44: #{tpu_custom_call.1} parent=27 // pred_fallthru
          _
      $region28: #{tpu_custom_call.1} parent=5 // pred_fallthru
        _
      %p355 = scmp.le.s32.totalorder 2, %s22
      // Predicated region
      $region45: #{tpu_custom_call.1} parent=5 // pred_check
        %p356 = pneg %p355
      $region46: #{tpu_custom_call.1} parent=5 // pred_check_branch
        %358 = sbr.rel (%p356) target = $region48
      $region47: #{tpu_custom_call.1} parent=5 // pred_region
        %s359 = ssub.s32 %s22, 2
        // Predicated region
        $region49: #{tpu_custom_call.1} parent=47 // pred_check
          %p360 = pneg %p134
        $region50: #{tpu_custom_call.1} parent=47 // pred_check_branch
          %362 = sbr.rel (%p360) target = $region52
        $region51: #{tpu_custom_call.1} parent=47 // pred_region
          %s363 = sand.u32 %s119, 1
          %s364 = scalar_lea.sflag [#allocation4], %s363
          %s365 = sand.u32 %s119, 1
          %s366 = smul.addr %s365, 6
          %s367 = scalar_lea.vmem [#allocation7], %s366
          %368 = dma.done %s364, 96
        $region52: #{tpu_custom_call.1} parent=47 // pred_fallthru
          _
        // Predicated region
        $region53: #{tpu_custom_call.1} parent=47 // pred_check
          %p369 = pneg %p164
        $region54: #{tpu_custom_call.1} parent=47 // pred_check_branch
          %371 = sbr.rel (%p369) target = $region56
        $region55: #{tpu_custom_call.1} parent=47 // pred_region
          %s372 = sand.u32 %s149, 1
          %s373 = scalar_lea.sflag [#allocation9], %s372
          %s374 = sand.u32 %s149, 1
          %s375 = smul.addr %s374, 6
          %s376 = scalar_lea.vmem [#allocation8], %s375
          %377 = dma.done %s373, 96
        $region56: #{tpu_custom_call.1} parent=47 // pred_fallthru
          _
      $region48: #{tpu_custom_call.1} parent=5 // pred_fallthru
        _
    $region6: #{tpu_custom_call.1} parent=1 // loop_footer
      %s26 = sadd.s32 1, %s22
    $region7: #{tpu_custom_call.1} parent=1 // loop_footer_branch
      %21 = sbr.rel target = $region3
    $region8: #{tpu_custom_call.1} parent=1 // loop_exit
      _
    %378 = vsyncpa [#allocation3], 1
    %s379 = scalar_lea.sflag [#allocation3], 1
    %380 = vsyncpa %s379, 1
    %381 = vsyncpa [#allocation6], 1
    %s382 = scalar_lea.sflag [#allocation6], 1
    %383 = vsyncpa %s382, 1
    %384 = vsyncpa [#allocation4], 1
    %s385 = scalar_lea.sflag [#allocation4], 1
    %386 = vsyncpa %s385, 1
    %387 = vsyncpa [#allocation9], 1
    %s388 = scalar_lea.sflag [#allocation9], 1
    %389 = vsyncpa %s388, 1

</llo_original>
